<compile_context>
chip_gen: v6e
topology: v6e:2x2x1
jax: 0.10.0
libtpu: 0.0.40
codegen_flags: <defaults>
</compile_context>

<pallas_src>
import functools

import jax
import jax.numpy as jnp
from jax import lax
from jax.experimental import pallas as pl
from jax.experimental.pallas import tpu as pltpu


_FOLD_W1_MAX_BYTES = 512 * 1024  # only fold the mean into W1 while tile(w1, N) stays VMEM-cheap


def _cdiv(a, b):
    return -(-a // b)


def _round_up(x, m):
    return ((x + m - 1) // m) * m


# --------------------------------------------------------------------------------------------
# Kernels
# --------------------------------------------------------------------------------------------

def _critic_kernel_folded(obs_ref, w1f_ref, b1_ref, w2_ref, b2_ref, w3_ref, b3_ref, v_ref):
    """obs_ref: (TB, N*F) lane-dense rows; node-mean is folded into w1f (H, N*F)."""
    x = obs_ref[...].astype(jnp.float32)                     # upcast after load (bf16 streaming)

    # Layer 1 (+ node pooling): (H, K) contracted with (TB, K) on K -> (H, TB).
    # Batch tile sits on the MXU-N / lane axis.  NOTE: the activation operand is fed in (TB, K)
    # orientation; if a vxpose on it ever surfaces in the bundle once obs streaming is cut,
    # reorient the tile — today MXU/XLU have large slack (kernel is HBM-streaming bound).
    h = lax.dot_general(w1f_ref[...], x, (((1,), (1,)), ((), ())),
                        preferred_element_type=jnp.float32) + b1_ref[...]
    h = jnp.maximum(h, 0.0)

    # Layer 2: (H, H) @ (H, TB) -> (H, TB)
    h = jnp.dot(w2_ref[...], h, preferred_element_type=jnp.float32) + b2_ref[...]
    h = jnp.maximum(h, 0.0)

    # Layer 3 (H -> 1): VPU multiply + sublane reduce (avoids a 1-column MXU pass).
    v_ref[...] = jnp.sum(w3_ref[...] * h, axis=0, keepdims=True) + b3_ref[...]   # (1, TB)


def _critic_kernel_pooled(obs_ref, w1_ref, b1_ref, w2_ref, b2_ref, w3_ref, b3_ref, v_ref, *,
                          inv_n):
    """Fallback for large H*N*F: obs_ref (TB, N, F), node pooling done in-kernel."""
    x = obs_ref[...].astype(jnp.float32)
    pooled = jnp.sum(x, axis=1) * inv_n                                           # (TB, F)
    h = lax.dot_general(w1_ref[...], pooled, (((1,), (1,)), ((), ())),
                        preferred_element_type=jnp.float32) + b1_ref[...]         # (H, TB)
    h = jnp.maximum(h, 0.0)
    h = jnp.dot(w2_ref[...], h, preferred_element_type=jnp.float32) + b2_ref[...]
    h = jnp.maximum(h, 0.0)
    v_ref[...] = jnp.sum(w3_ref[...] * h, axis=0, keepdims=True) + b3_ref[...]    # (1, TB)


# --------------------------------------------------------------------------------------------
# Tiling / VMEM budgeting
# --------------------------------------------------------------------------------------------

def _vmem_limits():
    """Generation-aware scoped-VMEM limit and obs double-buffer budget."""
    try:
        cap = pltpu.get_tpu_info().vmem_capacity_bytes   # 128 MiB v5e/v6e, 64 MiB per-TC v7x
    except Exception:
        cap = 64 << 20                                   # conservative (v7x) fallback
    vmem_limit = int(min(cap * 3 // 4, 64 << 20))        # ~64 MiB v5e/v6e, ~48 MiB v7x
    obs_budget = vmem_limit // 2                         # double-buffered obs pair <= half
    return vmem_limit, obs_budget


def _pick_batch_tile(B, row_bytes, obs_budget_bytes, sublane):
    """Largest batch tile whose double-buffered obs block fits the budget, preferring an even
    number of tiles (>= 2) so v7x's two TensorCores split the batch evenly."""
    tb = min(_round_up(B, sublane), 2048)
    while tb > sublane and 2 * tb * row_bytes > obs_budget_bytes:
        tb = _round_up(tb // 2, sublane)
    # TODO(synk): for very large N*F rows even TB == sublane may exceed the budget; that case
    # wants a second "arbitrary" grid axis over N with an accumulating pooled scratch.
    if B > 2 * sublane:
        while tb > sublane:
            n_tiles = _cdiv(B, tb)
            if n_tiles >= 2 and n_tiles % 2 == 0:
                break
            new_tb = _round_up(_cdiv(tb, 2), sublane)
            if new_tb == tb:
                break
            tb = new_tb
    if tb >= B:
        tb = B     # single full-array block along batch (always layout-legal)
    return tb


# --------------------------------------------------------------------------------------------
# Wrapper
# --------------------------------------------------------------------------------------------

def critic_forward(encoded_obs, params, *, stream_bf16=True):
    """Pallas Critic value head.

    encoded_obs : [B, N, node_fdim] float32 (or bf16) — output of encoder.encode (see TODO).
    params      : PyTorch-layout weights:
                    w1 (H, F), b1 (H, 1), w2 (H, H), b2 (H, 1), w3 (H, 1), b3 (1, 1)
    returns     : V(encoded_obs.mean(axis=1)) with shape [B, 1]
    """
    B, N, F = encoded_obs.shape
    H = params["w1"].shape[0]

    obs = encoded_obs
    if stream_bf16 and obs.dtype == jnp.float32:
        # TODO(synk): ideally the graph encoder emits bf16 directly so this cast is free.
        obs = obs.astype(jnp.bfloat16)
    itemsize = jnp.dtype(obs.dtype).itemsize

    vmem_limit, obs_budget = _vmem_limits()
    compiler_params = pltpu.CompilerParams(
        dimension_semantics=("parallel",),    # independent batch tiles (2 TCs on v7x)
        vmem_limit_bytes=vmem_limit,
    )
    const = lambda i: (0, 0)                  # weights/biases: same block -> VMEM-resident

    fold = H * N * F * 4 <= _FOLD_W1_MAX_BYTES
    if fold:
        # Lane-dense obs rows; node-mean folded into W1 (MXU K-axis absorbs the reduction).
        K = N * F
        obs2 = obs.reshape(B, K)
        w1f = (jnp.tile(params["w1"], (1, N)) / float(N)).astype(jnp.float32)     # (H, N*F)
        sublane = 16 if itemsize == 2 else 8          # TB is a tiled (sublane) dim here
        row_bytes = _round_up(K, 128) * itemsize
        TB = _pick_batch_tile(B, row_bytes, obs_budget, sublane)
        G = _cdiv(B, TB)
        out = pl.pallas_call(
            _critic_kernel_folded,
            out_shape=jax.ShapeDtypeStruct((G, TB), jnp.float32),
            grid=(G,),
            in_specs=[
                pl.BlockSpec((TB, K), lambda i: (i, 0)),     # obs, blocked along batch
                pl.BlockSpec((H, K), const),                 # w1 folded (mean absorbed)
                pl.BlockSpec((H, 1), const),                 # b1
                pl.BlockSpec((H, H), const),                 # w2
                pl.BlockSpec((H, 1), const),                 # b2
                pl.BlockSpec((H, 1), const),                 # w3 (column)
                pl.BlockSpec((1, 1), const),                 # b3
            ],
            out_specs=pl.BlockSpec((1, TB), lambda i: (i, 0)),   # lane-dense value row per tile
            compiler_params=compiler_params,
        )(obs2, w1f, params["b1"], params["w2"], params["b2"], params["w3"], params["b3"])
    else:
        # Large H*N*F: keep w1 compact and pool in-kernel on the (TB, N, F) block.
        kernel = functools.partial(_critic_kernel_pooled, inv_n=1.0 / N)
        row_bytes = (_round_up(N, 16 if itemsize == 2 else 8)
                     * _round_up(F, 128) * itemsize)
        TB = _pick_batch_tile(B, row_bytes, obs_budget, 8)   # TB is a leading (untiled) dim
        G = _cdiv(B, TB)
        out = pl.pallas_call(
            kernel,
            out_shape=jax.ShapeDtypeStruct((G, TB), jnp.float32),
            grid=(G,),
            in_specs=[
                pl.BlockSpec((TB, N, F), lambda i: (i, 0, 0)),
                pl.BlockSpec((H, F), const),
                pl.BlockSpec((H, 1), const),
                pl.BlockSpec((H, H), const),
                pl.BlockSpec((H, 1), const),
                pl.BlockSpec((H, 1), const),
                pl.BlockSpec((1, 1), const),
            ],
            out_specs=pl.BlockSpec((1, TB), lambda i: (i, 0)),
            compiler_params=compiler_params,
        )(obs, params["w1"], params["b1"], params["w2"], params["b2"],
          params["w3"], params["b3"])

    # (G, TB) -> [B, 1]; lanes of a padded edge tile are sliced away here.
    return out.reshape(-1)[:B].reshape(B, 1)


# --------------------------------------------------------------------------------------------
# Reference + self-test
# --------------------------------------------------------------------------------------------

def _reference(obs_f32, params):
    dot = functools.partial(jnp.matmul, precision=lax.Precision.HIGHEST)
    pooled = obs_f32.mean(axis=1)                                       # (B, F)
    h = jnp.maximum(dot(pooled, params["w1"].T) + params["b1"].T, 0.0)
    h = jnp.maximum(dot(h, params["w2"].T) + params["b2"].T, 0.0)
    return dot(h, params["w3"]) + params["b3"]                          # (B, 1)


def _make_inputs(key, B, N, F, H):
    ks = jax.random.split(key, 7)
    obs = jax.random.normal(ks[0], (B, N, F), dtype=jnp.float32)
    params = {
        "w1": jax.random.normal(ks[1], (H, F), dtype=jnp.float32) * 0.1,
        "b1": jax.random.normal(ks[2], (H, 1), dtype=jnp.float32) * 0.1,
        "w2": jax.random.normal(ks[3], (H, H), dtype=jnp.float32) * 0.1,
        "b2": jax.random.normal(ks[4], (H, 1), dtype=jnp.float32) * 0.1,
        "w3": jax.random.normal(ks[5], (H, 1), dtype=jnp.float32) * 0.1,
        "b3": jax.random.normal(ks[6], (1, 1), dtype=jnp.float32) * 0.1,
    }
    return obs, params


def _bf16_round(x):
    return x.astype(jnp.bfloat16).astype(jnp.float32)


if __name__ == "__main__":
    key = jax.random.PRNGKey(0)
    k0, k1, k2, k3 = jax.random.split(key, 4)

    # Critic sizes consistent with the module: node_fdim=32, hidden_dim=32, hidden_depth=2.
    B, N, F, H = 8, 8, 32, 32
    obs, params = _make_inputs(k0, B, N, F, H)

    # f32 streaming, folded-mean path, single full-batch tile.
    v = critic_forward(obs, params, stream_bf16=False)
    jax.block_until_ready(v)
    assert v.shape == (B, 1)
    assert jnp.allclose(v, _reference(obs, params), rtol=1e-3, atol=1e-3), "f32 small batch"

    # bf16 streaming (default): compare against the reference on the same bf16-rounded obs.
    v_bf = critic_forward(obs, params)
    jax.block_until_ready(v_bf)
    assert jnp.allclose(v_bf, _reference(_bf16_round(obs), params),
                        rtol=1e-3, atol=2e-3), "bf16 small batch"

    # Larger batch: even cdiv grid (TB=192, grid=2) with VMEM-resident weights.
    B2 = 384
    obs2, params2 = _make_inputs(k1, B2, N, F, H)
    v2 = critic_forward(obs2, params2)
    jax.block_until_ready(v2)
    assert v2.shape == (B2, 1)
    assert jnp.allclose(v2, _reference(_bf16_round(obs2), params2),
                        rtol=1e-3, atol=2e-3), "bf16 batched grid"

    # Non-divisible batch: partial last tile (B=100 -> TB=64, grid=2, 36 valid rows in tile 1).
    B3 = 100
    obs3, params3 = _make_inputs(k2, B3, N, F, H)
    v3 = critic_forward(obs3, params3)
    jax.block_until_ready(v3)
    assert v3.shape == (B3, 1)
    assert jnp.allclose(v3, _reference(_bf16_round(obs3), params3),
                        rtol=1e-3, atol=2e-3), "partial edge tile"

    # Large H*N*F: exercises the non-folded fallback kernel (in-kernel node pooling).
    B4, N4, F4, H4 = 64, 16, 128, 128
    obs4, params4 = _make_inputs(k3, B4, N4, F4, H4)
    v4 = critic_forward(obs4, params4)
    jax.block_until_ready(v4)
    assert v4.shape == (B4, 1)
    assert jnp.allclose(v4, _reference(_bf16_round(obs4), params4),
                        rtol=5e-3, atol=5e-3), "pooled fallback"

    print("KERNEL_OK")
</pallas_src>

<mosaic_0001>
module attributes {stable_mosaic.version = 11 : i64} {
  func.func @_critic_kernel_folded(%arg0: i32, %arg1: memref<8x256xf32, #tpu.memory_space<vmem>>, %arg2: memref<32x256xf32, #tpu.memory_space<vmem>>, %arg3: memref<32x1xf32, #tpu.memory_space<vmem>>, %arg4: memref<32x32xf32, #tpu.memory_space<vmem>>, %arg5: memref<32x1xf32, #tpu.memory_space<vmem>>, %arg6: memref<32x1xf32, #tpu.memory_space<vmem>>, %arg7: memref<1x1xf32, #tpu.memory_space<vmem>>, %arg8: memref<1x8xf32, #tpu.memory_space<vmem>>) attributes {dimension_semantics = [#tpu.dimension_semantics<parallel>], iteration_bounds = array<i64: 1>, scalar_prefetch = 0 : i64, scratch_operands = 0 : i64, tpu.core_type = #tpu.core_type<tc>, window_params = [{transform_indices = @transform_0, window_bounds = array<i64: 8, 256>}, {pipeline_mode = #tpu.pipeline_mode<synchronous>, transform_indices = @transform_1, window_bounds = array<i64: 32, 256>}, {pipeline_mode = #tpu.pipeline_mode<synchronous>, transform_indices = @transform_2, window_bounds = array<i64: 32, 1>}, {pipeline_mode = #tpu.pipeline_mode<synchronous>, transform_indices = @transform_3, window_bounds = array<i64: 32, 32>}, {pipeline_mode = #tpu.pipeline_mode<synchronous>, transform_indices = @transform_4, window_bounds = array<i64: 32, 1>}, {pipeline_mode = #tpu.pipeline_mode<synchronous>, transform_indices = @transform_5, window_bounds = array<i64: 32, 1>}, {pipeline_mode = #tpu.pipeline_mode<synchronous>, transform_indices = @transform_6, window_bounds = array<i64: 1, 1>}, {transform_indices = @transform_7, window_bounds = array<i64: 1, 8>}]} {
    %c0 = arith.constant 0 : index
    %c0_0 = arith.constant 0 : index
    %0 = vector.load %arg1[%c0, %c0_0] : memref<8x256xf32, #tpu.memory_space<vmem>>, vector<8x256xf32>
    %c0_1 = arith.constant 0 : index
    %c0_2 = arith.constant 0 : index
    %1 = vector.load %arg2[%c0_1, %c0_2] : memref<32x256xf32, #tpu.memory_space<vmem>>, vector<32x256xf32>
    %cst = arith.constant dense<0.000000e+00> : vector<32x8xf32>
    %2 = tpu.matmul %1, %0, %cst {dimension_numbers = #tpu.dot_dimension_numbers<[1], [1], [0], [0], [0, 0, 1, 0], [], []>} : vector<32x256xf32>, vector<8x256xf32>, vector<32x8xf32> -> vector<32x8xf32>
    %c0_3 = arith.constant 0 : index
    %c0_4 = arith.constant 0 : index
    %3 = vector.load %arg3[%c0_3, %c0_4] : memref<32x1xf32, #tpu.memory_space<vmem>>, vector<32x1xf32>
    %4 = vector.broadcast %3 : vector<32x1xf32> to vector<32x8xf32>
    %5 = arith.addf %2, %4 : vector<32x8xf32>
    %cst_5 = arith.constant 0.000000e+00 : f32
    %6 = vector.broadcast %cst_5 : f32 to vector<32x8xf32>
    %7 = arith.maximumf %5, %6 : vector<32x8xf32>
    %c0_6 = arith.constant 0 : index
    %c0_7 = arith.constant 0 : index
    %8 = vector.load %arg4[%c0_6, %c0_7] : memref<32x32xf32, #tpu.memory_space<vmem>>, vector<32x32xf32>
    %cst_8 = arith.constant dense<0.000000e+00> : vector<32x8xf32>
    %9 = tpu.matmul %8, %7, %cst_8 {dimension_numbers = #tpu.dot_dimension_numbers<[1], [0], [0], [1], [0, 0, 1, 1], [], []>} : vector<32x32xf32>, vector<32x8xf32>, vector<32x8xf32> -> vector<32x8xf32>
    %c0_9 = arith.constant 0 : index
    %c0_10 = arith.constant 0 : index
    %10 = vector.load %arg5[%c0_9, %c0_10] : memref<32x1xf32, #tpu.memory_space<vmem>>, vector<32x1xf32>
    %11 = vector.broadcast %10 : vector<32x1xf32> to vector<32x8xf32>
    %12 = arith.addf %9, %11 : vector<32x8xf32>
    %cst_11 = arith.constant 0.000000e+00 : f32
    %13 = vector.broadcast %cst_11 : f32 to vector<32x8xf32>
    %14 = arith.maximumf %12, %13 : vector<32x8xf32>
    %c0_12 = arith.constant 0 : index
    %c0_13 = arith.constant 0 : index
    %15 = vector.load %arg6[%c0_12, %c0_13] : memref<32x1xf32, #tpu.memory_space<vmem>>, vector<32x1xf32>
    %16 = vector.broadcast %15 : vector<32x1xf32> to vector<32x8xf32>
    %17 = arith.mulf %16, %14 : vector<32x8xf32>
    %cst_14 = arith.constant dense<0.000000e+00> : vector<8xf32>
    %18 = vector.multi_reduction <add>, %17, %cst_14 [0] : vector<32x8xf32> to vector<8xf32>
    %19 = vector.shape_cast %18 : vector<8xf32> to vector<1x8xf32>
    %c0_15 = arith.constant 0 : index
    %c0_16 = arith.constant 0 : index
    %20 = vector.load %arg7[%c0_15, %c0_16] : memref<1x1xf32, #tpu.memory_space<vmem>>, vector<1x1xf32>
    %21 = vector.broadcast %20 : vector<1x1xf32> to vector<1x8xf32>
    %22 = arith.addf %19, %21 : vector<1x8xf32>
    %c0_17 = arith.constant 0 : index
    %c0_18 = arith.constant 0 : index
    %23 = vector.load %arg8[%c0_17, %c0_18] : memref<1x8xf32, #tpu.memory_space<vmem>>, vector<1x8xf32>
    tpu.vector_store %arg8[%c0_17, %c0_18], %22 {strides = array<i32>} : memref<1x8xf32, #tpu.memory_space<vmem>>, vector<1x8xf32>,
    return
  }
  func.func @transform_0(%arg0: i32) -> (i32, i32) {
    %c0_i32 = arith.constant 0 : i32
    %c0_i32_0 = arith.constant 0 : i32
    return %arg0, %c0_i32 : i32, i32
  }
  func.func @transform_1(%arg0: i32) -> (i32, i32) {
    %c0_i32 = arith.constant 0 : i32
    %c0_i32_0 = arith.constant 0 : i32
    %c0_i32_1 = arith.constant 0 : i32
    return %c0_i32, %c0_i32_0 : i32, i32
  }
  func.func @transform_2(%arg0: i32) -> (i32, i32) {
    %c0_i32 = arith.constant 0 : i32
    %c0_i32_0 = arith.constant 0 : i32
    %c0_i32_1 = arith.constant 0 : i32
    return %c0_i32, %c0_i32_0 : i32, i32
  }
  func.func @transform_3(%arg0: i32) -> (i32, i32) {
    %c0_i32 = arith.constant 0 : i32
    %c0_i32_0 = arith.constant 0 : i32
    %c0_i32_1 = arith.constant 0 : i32
    return %c0_i32, %c0_i32_0 : i32, i32
  }
  func.func @transform_4(%arg0: i32) -> (i32, i32) {
    %c0_i32 = arith.constant 0 : i32
    %c0_i32_0 = arith.constant 0 : i32
    %c0_i32_1 = arith.constant 0 : i32
    return %c0_i32, %c0_i32_0 : i32, i32
  }
  func.func @transform_5(%arg0: i32) -> (i32, i32) {
    %c0_i32 = arith.constant 0 : i32
    %c0_i32_0 = arith.constant 0 : i32
    %c0_i32_1 = arith.constant 0 : i32
    return %c0_i32, %c0_i32_0 : i32, i32
  }
  func.func @transform_6(%arg0: i32) -> (i32, i32) {
    %c0_i32 = arith.constant 0 : i32
    %c0_i32_0 = arith.constant 0 : i32
    %c0_i32_1 = arith.constant 0 : i32
    return %c0_i32, %c0_i32_0 : i32, i32
  }
  func.func @transform_7(%arg0: i32) -> (i32, i32) {
    %c0_i32 = arith.constant 0 : i32
    %c0_i32_0 = arith.constant 0 : i32
    return %arg0, %c0_i32 : i32, i32
  }
}

</mosaic_0001>

<llo_original>
// kernel: tpu_custom_call.1
$region0: #{tpu_custom_call.1}
  #allocation0 [shape = 'u32[]', space=smem, size = 0x4, offset = 0x4, fixed_abs, tag = 'smem constant byte address 0x4 - core index']
  #allocation1 [shape = 'u32[144,128]{1,0:T(1,128)}', space=vmem, size = 0x12000, scoped, tag = 'internal scratch']
  #allocation2 [shape = 'f32[1,1]{1,0:T(1,128)S(1)}', space=vmem, size = 0x200, scoped, tag = 'scoped memory for tpu_custom_call.1']
  %s0 = inlined_call_operand.hbm [shape: f32[8,256], index: 0, kind: input, shape index: {}]
  %s1 = inlined_call_operand.vmem [shape: f32[32,256], index: 1, kind: input, shape index: {}]
  %s2 = inlined_call_operand.vmem [shape: f32[32,1], index: 2, kind: input, shape index: {}]
  %s3 = inlined_call_operand.vmem [shape: f32[32,32], index: 3, kind: input, shape index: {}]
  %s4 = inlined_call_operand.vmem [shape: f32[32,1], index: 4, kind: input, shape index: {}]
  %s5 = inlined_call_operand.vmem [shape: f32[32,1], index: 5, kind: input, shape index: {}]
  %s6 = inlined_call_operand.<no memory space> [shape: f32[1,1], index: 6, kind: input, shape index: {}]
  %s7 = inlined_call_operand.hbm [shape: f32[1,8], index: 7, kind: output, shape index: {}]
  %s8 = sld [smem:[#allocation0]]
  $region42: #{tpu_custom_call.1} parent=0
    _
  %s10 = ssub.s32 1, %s8
  %s11 = scalar_select 0, %s10, %s8
  %v12 = vstv %s6
  %13 = vst [vmem:[#allocation2] sm:$0x1] %v12
  $region1: #{tpu_custom_call.1} parent=0
    #allocation3 [shape = 'u8[8192]{0}', space=vmem, size = 0x2000, scoped, tag = 'input window, operand 0, single buffered']
    #allocation4 [shape = 's32[1]{0}', space=sflag, size = 0x4, scoped, tag = 'scoped memory for tpu_custom_call.1']
    #allocation5 [shape = 's32[1]{0}', space=sflag, size = 0x4, scoped, tag = 'scoped memory for tpu_custom_call.1']
    #allocation6 [shape = 'u8[512]{0}', space=vmem, size = 0x400, scoped, tag = 'output window, operand 0, single buffered']
    %14 = vsyncpa [#allocation4], 0
    %15 = vsyncpa [#allocation5], 0
    // Predicated region
    $region2: #{tpu_custom_call.1} parent=1 // pred_check
      _
    $region3: #{tpu_custom_call.1} parent=1 // pred_check_branch
      %17 = sbr.rel (0) target = $region5
    $region4: #{tpu_custom_call.1} parent=1 // pred_region
      %s19 = ssub.s32 256, 256
      %20 = vsyncadd [#allocation4], %s19
      %s22 = sshll.u32 [#allocation3], 4
      %s23 = int_to_ptr.vmem [resolvable:$true] %s22
      %25 = dma.hbm_to_vmem [thread:$0]  %s0, 256, %s23, [#allocation4]
    $region5: #{tpu_custom_call.1} parent=1 // pred_fallthru
      _
    // Predicated region
    $region6: #{tpu_custom_call.1} parent=1 // pred_check
      _
    $region7: #{tpu_custom_call.1} parent=1 // pred_check_branch
      %27 = sbr.rel (0) target = $region9
    $region8: #{tpu_custom_call.1} parent=1 // pred_region
      _
    $region9: #{tpu_custom_call.1} parent=1 // pred_fallthru
      _
    // Predicated region
    $region10: #{tpu_custom_call.1} parent=1 // pred_check
      _
    $region11: #{tpu_custom_call.1} parent=1 // pred_check_branch
      %29 = sbr.rel (0) target = $region13
    $region12: #{tpu_custom_call.1} parent=1 // pred_region
      _
    $region13: #{tpu_custom_call.1} parent=1 // pred_fallthru
      _
    // Predicated region
    $region14: #{tpu_custom_call.1} parent=1 // pred_check
      _
    $region15: #{tpu_custom_call.1} parent=1 // pred_check_branch
      %31 = sbr.rel (0) target = $region17
    $region16: #{tpu_custom_call.1} parent=1 // pred_region
      _
    $region17: #{tpu_custom_call.1} parent=1 // pred_fallthru
      _
    // Predicated region
    $region18: #{tpu_custom_call.1} parent=1 // pred_check
      _
    $region19: #{tpu_custom_call.1} parent=1 // pred_check_branch
      %33 = sbr.rel (0) target = $region21
    $region20: #{tpu_custom_call.1} parent=1 // pred_region
      _
    $region21: #{tpu_custom_call.1} parent=1 // pred_fallthru
      _
    // Predicated region
    $region22: #{tpu_custom_call.1} parent=1 // pred_check
      _
    $region23: #{tpu_custom_call.1} parent=1 // pred_check_branch
      %35 = sbr.rel (0) target = $region25
    $region24: #{tpu_custom_call.1} parent=1 // pred_region
      _
    $region25: #{tpu_custom_call.1} parent=1 // pred_fallthru
      _
    // Predicated region
    $region26: #{tpu_custom_call.1} parent=1 // pred_check
      _
    $region27: #{tpu_custom_call.1} parent=1 // pred_check_branch
      %37 = sbr.rel (0) target = $region29
    $region28: #{tpu_custom_call.1} parent=1 // pred_region
      _
    $region29: #{tpu_custom_call.1} parent=1 // pred_fallthru
      _
    // Predicated region
    $region30: #{tpu_custom_call.1} parent=1 // pred_check
      _
    $region31: #{tpu_custom_call.1} parent=1 // pred_check_branch
      %39 = sbr.rel (0) target = $region33
    $region32: #{tpu_custom_call.1} parent=1 // pred_region
      %40 = dma.done [#allocation4], 256
    $region33: #{tpu_custom_call.1} parent=1 // pred_fallthru
      _
    %v41 = vld [vmem:[#allocation3] sm:$0xff]
    %v42 = vld [vmem:[#allocation3 + $0x8] sm:$0xff]
    %v43 = vld [vmem:[%s1] sm:$0xff]
    %v44 = vld [vmem:[%s1 + $0x8] sm:$0xff]
    %v45 = vld [vmem:[%s1 + $0x10] sm:$0xff]
    %v46 = vld [vmem:[%s1 + $0x18] sm:$0xff]
    %v47 = vld [vmem:[%s1 + $0x20] sm:$0xff]
    %v48 = vld [vmem:[%s1 + $0x28] sm:$0xff]
    %v49 = vld [vmem:[%s1 + $0x30] sm:$0xff]
    %v50 = vld [vmem:[%s1 + $0x38] sm:$0xff]
    %v51 = vld [vmem:[%s2] sm:$0xff]
    %v52 = vld [vmem:[%s2 + $0x8] sm:$0xff]
    %v53 = vld [vmem:[%s2 + $0x10] sm:$0xff]
    %v54 = vld [vmem:[%s2 + $0x18] sm:$0xff]
    %56 = vset.pattern.permute.xlu0 0
    %57 = vperm.xlu0 %56, %v51
    %v58 = vpop.permute.xlu0 %57
    %61 = vset.pattern.permute.xlu0 0
    %62 = vperm.xlu0 %61, %v52
    %v63 = vpop.permute.xlu0 %62
    %66 = vset.pattern.permute.xlu0 0
    %67 = vperm.xlu0 %66, %v53
    %v68 = vpop.permute.xlu0 %67
    %71 = vset.pattern.permute.xlu0 0
    %72 = vperm.xlu0 %71, %v54
    %v73 = vpop.permute.xlu0 %72
    %75 = vmatprep.subr.mxu0 0.0
    %76 = vmatpush1.xpose.msra.mxu0 0.0
    %77 = vmatprep.subr.mxu0 0.0
    %78 = vmatpush1.xpose.msra.mxu0 0.0
    %79 = vmatprep.subr.mxu0 0.0
    %80 = vmatpush1.xpose.msra.mxu0 0.0
    %81 = vmatprep.subr.mxu0 0.0
    %82 = vmatpush1.xpose.msra.mxu0 0.0
    %83 = vmatprep.subr.mxu0 0.0
    %84 = vmatpush1.xpose.msra.mxu0 0.0
    %85 = vmatprep.subr.mxu0 0.0
    %86 = vmatpush1.xpose.msra.mxu0 0.0
    %87 = vmatprep.subr.mxu0 0.0
    %88 = vmatpush1.xpose.msra.mxu0 0.0
    %89 = vmatprep.subr.mxu0 0.0
    %90 = vmatpush1.xpose.msra.mxu0 0.0
    %91 = vmatprep.subr.mxu0 0.0
    %92 = vmatpush1.xpose.msra.mxu0 0.0
    %93 = vmatprep.subr.mxu0 0.0
    %94 = vmatpush1.xpose.msra.mxu0 0.0
    %95 = vmatprep.subr.mxu0 0.0
    %96 = vmatpush1.xpose.msra.mxu0 0.0
    %97 = vmatprep.subr.mxu0 0.0
    %98 = vmatpush1.xpose.msra.mxu0 0.0
    %99 = vmatprep.subr.mxu0 0.0
    %100 = vmatpush1.xpose.msra.mxu0 0.0
    %101 = vmatprep.subr.mxu0 0.0
    %102 = vmatpush1.xpose.msra.mxu0 0.0
    %103 = vmatprep.subr.mxu0 0.0
    %104 = vmatpush1.xpose.msra.mxu0 0.0
    %105 = vmatprep.subr.mxu0 %v42
    %106 = vmatpush1.xpose.msra.mxu0 %v41
    %107 = vmatprep.subr.mxu0 0.0
    %108 = vmatpush2.xpose.msra.mxu0 0.0
    %109 = vmatprep.subr.mxu0 0.0
    %110 = vmatpush2.xpose.msra.mxu0 0.0
    %111 = vmatprep.subr.mxu0 0.0
    %112 = vmatpush2.xpose.msra.mxu0 0.0
    %113 = vmatprep.subr.mxu0 0.0
    %114 = vmatpush2.xpose.msra.mxu0 0.0
    %115 = vmatprep.subr.mxu0 0.0
    %116 = vmatpush2.xpose.msra.mxu0 0.0
    %117 = vmatprep.subr.mxu0 0.0
    %118 = vmatpush2.xpose.msra.mxu0 0.0
    %119 = vmatprep.subr.mxu0 0.0
    %120 = vmatpush2.xpose.msra.mxu0 0.0
    %121 = vmatprep.subr.mxu0 0.0
    %122 = vmatpush2.xpose.msra.mxu0 0.0
    %123 = vmatprep.subr.mxu0 0.0
    %124 = vmatpush2.xpose.msra.mxu0 0.0
    %125 = vmatprep.subr.mxu0 0.0
    %126 = vmatpush2.xpose.msra.mxu0 0.0
    %127 = vmatprep.subr.mxu0 0.0
    %128 = vmatpush2.xpose.msra.mxu0 0.0
    %129 = vmatprep.subr.mxu0 0.0
    %130 = vmatpush2.xpose.msra.mxu0 0.0
    %131 = vmatprep.subr.mxu0 0.0
    %132 = vmatpush2.xpose.msra.mxu0 0.0
    %133 = vmatprep.subr.mxu0 0.0
    %134 = vmatpush2.xpose.msra.mxu0 0.0
    %135 = vmatprep.subr.mxu0 0.0
    %136 = vmatpush2.xpose.msra.mxu0 0.0
    %137 = vmatprep.subr.mxu0 0.0
    %138 = vmatpush2.xpose.msra.mxu0 0.0
    %139 = vmatprep.mubr.f32.mxu0 %v44
    %140 = vmatmul.mubr.f32.gmra.mxu0 %v43
    %v141 = vpop.f32.mrf.mxu0
    %v142 = vadd.f32 %v58, %v141
    %v143 = vpop.f32.mrf.mxu0
    %144 = vmatprep.mubr.f32.mxu0 %v46
    %145 = vmatmul.mubr.f32.gmra.mxu0 %v45
    %v146 = vpop.f32.mrf.mxu0
    %v147 = vadd.f32 %v63, %v146
    %v148 = vpop.f32.mrf.mxu0
    %149 = vmatprep.mubr.f32.mxu0 %v48
    %150 = vmatmul.mubr.f32.gmra.mxu0 %v47
    %v151 = vpop.f32.mrf.mxu0
    %v152 = vadd.f32 %v68, %v151
    %v153 = vpop.f32.mrf.mxu0
    %154 = vmatprep.mubr.f32.mxu0 %v50
    %155 = vmatmul.mubr.f32.gmra.mxu0 %v49
    %v156 = vpop.f32.mrf.mxu0
    %v157 = vadd.f32 %v73, %v156
    %v158 = vpop.f32.mrf.mxu0
    %159 = vdwg.mxu0
    %v160 = vmax.f32 %v142, 0.0
    %v161 = vmax.f32 %v147, 0.0
    %v162 = vmax.f32 %v152, 0.0
    %v163 = vmax.f32 %v157, 0.0
    %v164 = vld [vmem:[%s3] sm:$0xff]
    %v165 = vld [vmem:[%s3 + $0x8] sm:$0xff]
    %v166 = vld [vmem:[%s3 + $0x10] sm:$0xff]
    %v167 = vld [vmem:[%s3 + $0x18] sm:$0xff]
    %v168 = vld [vmem:[%s4] sm:$0xff]
    %v169 = vld [vmem:[%s4 + $0x8] sm:$0xff]
    %v170 = vld [vmem:[%s4 + $0x10] sm:$0xff]
    %v171 = vld [vmem:[%s4 + $0x18] sm:$0xff]
    %173 = vset.pattern.permute.xlu0 0
    %174 = vperm.xlu0 %173, %v168
    %v175 = vpop.permute.xlu0 %174
    %178 = vset.pattern.permute.xlu0 0
    %179 = vperm.xlu0 %178, %v169
    %v180 = vpop.permute.xlu0 %179
    %183 = vset.pattern.permute.xlu0 0
    %184 = vperm.xlu0 %183, %v170
    %v185 = vpop.permute.xlu0 %184
    %188 = vset.pattern.permute.xlu0 0
    %189 = vperm.xlu0 %188, %v171
    %v190 = vpop.permute.xlu0 %189
    %vm192 = vcmask 261120
    %v194 = vsel %vm192, %v164, 0
    %v197 = vsel %vm192, %v165, 0
    %v200 = vsel %vm192, %v166, 0
    %v203 = vsel %vm192, %v167, 0
    %205 = vmatprep.subr.mxu0 0.0
    %206 = vmatpush1.msra.mxu0 0.0
    %207 = vmatprep.subr.mxu0 0.0
    %208 = vmatpush1.msra.mxu0 0.0
    %209 = vmatprep.subr.mxu0 0.0
    %210 = vmatpush1.msra.mxu0 0.0
    %211 = vmatprep.subr.mxu0 0.0
    %212 = vmatpush1.msra.mxu0 0.0
    %213 = vmatprep.subr.mxu0 0.0
    %214 = vmatpush1.msra.mxu0 0.0
    %215 = vmatprep.subr.mxu0 0.0
    %216 = vmatpush1.msra.mxu0 0.0
    %217 = vmatprep.subr.mxu0 0.0
    %218 = vmatpush1.msra.mxu0 0.0
    %219 = vmatprep.subr.mxu0 0.0
    %220 = vmatpush1.msra.mxu0 0.0
    %221 = vmatprep.subr.mxu0 0.0
    %222 = vmatpush1.msra.mxu0 0.0
    %223 = vmatprep.subr.mxu0 0.0
    %224 = vmatpush1.msra.mxu0 0.0
    %225 = vmatprep.subr.mxu0 0.0
    %226 = vmatpush1.msra.mxu0 0.0
    %227 = vmatprep.subr.mxu0 0.0
    %228 = vmatpush1.msra.mxu0 0.0
    %229 = vmatprep.subr.mxu0 0.0
    %230 = vmatpush1.msra.mxu0 %v163
    %231 = vmatprep.subr.mxu0 0.0
    %232 = vmatpush1.msra.mxu0 %v162
    %233 = vmatprep.subr.mxu0 0.0
    %234 = vmatpush1.msra.mxu0 %v161
    %235 = vmatprep.subr.mxu0 0.0
    %236 = vmatpush1.msra.mxu0 %v160
    %237 = vmatprep.subr.mxu0 0.0
    %238 = vmatpush2.msra.mxu0 0.0
    %239 = vmatprep.subr.mxu0 0.0
    %240 = vmatpush2.msra.mxu0 0.0
    %241 = vmatprep.subr.mxu0 0.0
    %242 = vmatpush2.msra.mxu0 0.0
    %243 = vmatprep.subr.mxu0 0.0
    %244 = vmatpush2.msra.mxu0 0.0
    %245 = vmatprep.subr.mxu0 0.0
    %246 = vmatpush2.msra.mxu0 0.0
    %247 = vmatprep.subr.mxu0 0.0
    %248 = vmatpush2.msra.mxu0 0.0
    %249 = vmatprep.subr.mxu0 0.0
    %250 = vmatpush2.msra.mxu0 0.0
    %251 = vmatprep.subr.mxu0 0.0
    %252 = vmatpush2.msra.mxu0 0.0
    %253 = vmatprep.subr.mxu0 0.0
    %254 = vmatpush2.msra.mxu0 0.0
    %255 = vmatprep.subr.mxu0 0.0
    %256 = vmatpush2.msra.mxu0 0.0
    %257 = vmatprep.subr.mxu0 0.0
    %258 = vmatpush2.msra.mxu0 0.0
    %259 = vmatprep.subr.mxu0 0.0
    %260 = vmatpush2.msra.mxu0 0.0
    %261 = vmatprep.subr.mxu0 0.0
    %262 = vmatpush2.msra.mxu0 0.0
    %263 = vmatprep.subr.mxu0 0.0
    %264 = vmatpush2.msra.mxu0 0.0
    %265 = vmatprep.subr.mxu0 0.0
    %266 = vmatpush2.msra.mxu0 0.0
    %267 = vmatprep.subr.mxu0 0.0
    %268 = vmatpush2.msra.mxu0 0.0
    %269 = vmatprep.mubr.f32.mxu0 0.0
    %270 = vmatmul.mubr.f32.gmra.mxu0 %v194
    %v271 = vpop.f32.mrf.mxu0
    %v272 = vadd.f32 %v175, %v271
    %v273 = vpop.f32.mrf.mxu0
    %274 = vmatprep.mubr.f32.mxu0 0.0
    %275 = vmatmul.mubr.f32.gmra.mxu0 %v197
    %v276 = vpop.f32.mrf.mxu0
    %v277 = vadd.f32 %v180, %v276
    %v278 = vpop.f32.mrf.mxu0
    %279 = vmatprep.mubr.f32.mxu0 0.0
    %280 = vmatmul.mubr.f32.gmra.mxu0 %v200
    %v281 = vpop.f32.mrf.mxu0
    %v282 = vadd.f32 %v185, %v281
    %v283 = vpop.f32.mrf.mxu0
    %284 = vmatprep.mubr.f32.mxu0 0.0
    %285 = vmatmul.mubr.f32.gmra.mxu0 %v203
    %v286 = vpop.f32.mrf.mxu0
    %v287 = vadd.f32 %v190, %v286
    %v288 = vpop.f32.mrf.mxu0
    %289 = vdwg.mxu0
    %v290 = vmax.f32 %v272, 0.0
    %v291 = vmax.f32 %v277, 0.0
    %v292 = vmax.f32 %v282, 0.0
    %v293 = vmax.f32 %v287, 0.0
    %v294 = vld [vmem:[%s5] sm:$0xff]
    %v295 = vld [vmem:[%s5 + $0x8] sm:$0xff]
    %v296 = vld [vmem:[%s5 + $0x10] sm:$0xff]
    %v297 = vld [vmem:[%s5 + $0x18] sm:$0xff]
    %299 = vset.pattern.permute.xlu0 0
    %300 = vperm.xlu0 %299, %v294
    %v301 = vpop.permute.xlu0 %300
    %304 = vset.pattern.permute.xlu0 0
    %305 = vperm.xlu0 %304, %v295
    %v306 = vpop.permute.xlu0 %305
    %309 = vset.pattern.permute.xlu0 0
    %310 = vperm.xlu0 %309, %v296
    %v311 = vpop.permute.xlu0 %310
    %314 = vset.pattern.permute.xlu0 0
    %315 = vperm.xlu0 %314, %v297
    %v316 = vpop.permute.xlu0 %315
    %v318 = vmul.f32 %v301, %v290
    %v319 = vmul.f32 %v306, %v291
    %v320 = vmul.f32 %v311, %v292
    %v321 = vmul.f32 %v316, %v293
    %vm322 = vcmask 64512
    %v323 = vsel %vm322, %v318, 0.0
    %v324 = vsel %vm322, %v319, 0.0
    %v325 = vadd.f32 %v323, %v324
    %v326 = vsel %vm322, %v320, 0.0
    %v327 = vadd.f32 %v325, %v326
    %v328 = vsel %vm322, %v321, 0.0
    %v329 = vadd.f32 %v327, %v328
    %v330 = vrot.slane %v329, 4
    %v331 = vadd.f32 %v329, %v330
    %v332 = vrot.slane %v331, 2
    %v333 = vadd.f32 %v331, %v332
    %v334 = vrot.slane %v333, 1
    %v335 = vadd.f32 %v333, %v334
    %v336 = vld [vmem:[#allocation2] sm:$0x1]
    %338 = vset.pattern.permute.xlu0 0
    %339 = vperm.xlu0 %338, %v336
    %v340 = vpop.permute.xlu0 %339
    %v342 = vlaneseq
    %v343 = vshrl.u32 %v342, 7
    %v344 = vsub.s32 0, %v343
    %v345 = vrot.slane %v340, %v344
    %v346 = vadd.f32 %v335, %v345
    %vm347 = vcmask 57344
    %348 = vst.msk [vmem:[#allocation6] sm:$0x1] %vm347, %v346
    // Predicated region
    $region34: #{tpu_custom_call.1} parent=1 // pred_check
      _
    $region35: #{tpu_custom_call.1} parent=1 // pred_check_branch
      %350 = sbr.rel (0) target = $region37
    $region36: #{tpu_custom_call.1} parent=1 // pred_region
      %s352 = ssub.s32 16, 16
      %353 = vsyncadd [#allocation5], %s352
      %s355 = sshll.u32 [#allocation6], 4
      %s356 = int_to_ptr.vmem [resolvable:$true] %s355
      %358 = dma.vmem_to_hbm [thread:$0]  %s356, 16, %s7, [#allocation5]
    $region37: #{tpu_custom_call.1} parent=1 // pred_fallthru
      _
    // Predicated region
    $region38: #{tpu_custom_call.1} parent=1 // pred_check
      _
    $region39: #{tpu_custom_call.1} parent=1 // pred_check_branch
      %360 = sbr.rel (0) target = $region41
    $region40: #{tpu_custom_call.1} parent=1 // pred_region
      %361 = dma.done [#allocation5], 16
    $region41: #{tpu_custom_call.1} parent=1 // pred_fallthru
      _
    %362 = vsyncpa [#allocation4], 1
    %363 = vsyncpa [#allocation5], 1

</llo_original>
